<compile_context>
chip_gen: v6e
topology: v6e:2x2x1
jax: 0.10.0
libtpu: 0.0.40
codegen_flags: <defaults>
</compile_context>

<pallas_src>
import jax
import jax.numpy as jnp
from jax.experimental import pallas as pl
from jax.experimental.pallas import tpu as pltpu


def _conv_bn_lrelu_kernel(x_ref, t_ref, scale_ref, bias_ref, o_ref):
    # x_ref:     (TH, Kp)  bf16  im2col'd activation rows (Kp = KH*W*Cin padded to 128k)
    # t_ref:     (Kp, LT)  bf16  block-Toeplitz conv weights (lane tile of Wo*Cout)
    # scale_ref: (1, LT)   f32   folded eval-mode BN scale (per out channel, tiled over Wo)
    # bias_ref:  (1, LT)   f32   folded conv-bias + BN shift
    # o_ref:     (TH, LT)  bf16  lane-dense output tile
    acc = jnp.dot(x_ref[...], t_ref[...], preferred_element_type=jnp.float32)
    y = acc * scale_ref[...] + bias_ref[...]       # eval-mode BatchNorm affine
    y = jnp.maximum(y, 0.1 * y)                    # LeakyReLU(negative_slope=0.1)
    o_ref[...] = y.astype(o_ref.dtype)             # bf16, unmasked lane-dense store


def _round_up(x, m):
    return (x + m - 1) // m * m


def _pick_row_tile(total_rows, max_tile=128):
    """Largest multiple-of-8 divisor of total_rows (<= max_tile); prefer >= 2
    grid steps so both of v7x's TensorCores get work."""
    cands = [t for t in range(8, min(total_rows, max_tile) + 1, 8)
             if total_rows % t == 0]
    if not cands:
        return total_rows                           # full-dim block (still legal)
    multi = [t for t in cands if total_rows // t >= 2]
    return max(multi) if multi else max(cands)


def _pick_lane_tile(lout, max_lanes=512):
    """Output lane tile: full width if small, else the largest 128-multiple
    divisor <= max_lanes (keeps the per-tile Toeplitz slice VMEM-sized on v7x)."""
    if lout <= max_lanes:
        return lout
    for t in range(max_lanes, 127, -128):
        if lout % t == 0:
            return t
    return lout


def pack_conv_bn_params(w_oihw, b_conv, gamma, beta, run_mean, run_var,
                        *, W, padding=1, eps=1e-5):
    """Precompute (once per layer) the block-Toeplitz weight + folded BN affine.

    T[kh*W*Cin + wi*Cin + ci, wo*Cout + co] = w[co, ci, kh, kw] where
    wi == wo + kw - padding (out-of-range wi absent -> implicit W zero padding)."""
    Cout, Cin, KH, KW = w_oihw.shape
    Wo = W + 2 * padding - KW + 1
    w_k = jnp.transpose(w_oihw, (2, 3, 1, 0)).astype(jnp.float32)   # (KH,KW,Cin,Cout)
    wi = jnp.arange(W)
    wo = jnp.arange(Wo)
    kw = jnp.arange(KW)
    shift = (wi[None, :, None] == (wo[None, None, :] + kw[:, None, None] - padding))
    t = jnp.einsum("qvw,kqio->kviwo", shift.astype(jnp.float32), w_k)
    K = KH * W * Cin
    Kp = _round_up(K, 128)
    t = t.reshape(K, Wo * Cout)
    t = jnp.pad(t, ((0, Kp - K), (0, 0))).astype(jnp.bfloat16)      # zero rows match lane pad

    s = gamma / jnp.sqrt(run_var + eps)
    scale = jnp.tile(s, Wo).reshape(1, Wo * Cout).astype(jnp.float32)
    bias = jnp.tile(beta + (b_conv - run_mean) * s, Wo) \
              .reshape(1, Wo * Cout).astype(jnp.float32)
    return t, scale, bias


def nchw_to_cols(x_nchw, *, KH, padding=1):
    """NCHW f32 -> im2col-over-KH bf16 slab of shape (N*Ho, Kp).

    TODO(synk): in a real network activations should stay in this slab format
    between layers so the transpose/pad/cast isn't redone every layer."""
    N, Cin, H, W = x_nchw.shape
    Ho = H + 2 * padding - KH + 1
    x = jnp.transpose(x_nchw, (0, 2, 3, 1))                         # NHWC
    x = jnp.pad(x, ((0, 0), (padding, padding), (0, 0), (0, 0)))    # pad H only
    x = x.reshape(N, H + 2 * padding, W * Cin)
    cols = jnp.concatenate([x[:, kh:kh + Ho, :] for kh in range(KH)], axis=-1)
    K = KH * W * Cin
    Kp = _round_up(K, 128)
    cols = cols.reshape(N * Ho, K)
    cols = jnp.pad(cols, ((0, 0), (0, Kp - K)))                     # lane-dense contraction
    return cols.astype(jnp.bfloat16)


def conv_bn_lrelu_slab(x_cols, t, scale, bias):
    """Fused conv + eval-mode BN + LeakyReLU on the slab layout.

    x_cols: (R, Kp) bf16, t: (Kp, Lout) bf16, scale/bias: (1, Lout) f32.
    Returns a lane-dense (R, Lout) bf16 output slab."""
    R, Kp = x_cols.shape
    Kp_t, Lout = t.shape
    assert Kp == Kp_t
    TH = _pick_row_tile(R)
    LT = _pick_lane_tile(Lout)

    # TODO(synk): when tiles grow, single-buffer the grid-invariant inputs
    #             (t/scale/bias) via pipeline_mode to reclaim VMEM on v7x.
    return pl.pallas_call(
        _conv_bn_lrelu_kernel,
        out_shape=jax.ShapeDtypeStruct((R, Lout), jnp.bfloat16),
        grid=(R // TH, Lout // LT),
        in_specs=[
            pl.BlockSpec((TH, Kp), lambda i, j: (i, 0)),
            pl.BlockSpec((Kp, LT), lambda i, j: (0, j)),
            pl.BlockSpec((1, LT), lambda i, j: (0, j)),
            pl.BlockSpec((1, LT), lambda i, j: (0, j)),
        ],
        out_specs=pl.BlockSpec((TH, LT), lambda i, j: (i, j)),
        compiler_params=pltpu.CompilerParams(
            dimension_semantics=("parallel", "parallel"),
            vmem_limit_bytes=32 * 1024 * 1024,   # fits scoped VMEM on v5e/v6e/v7x
        ),
    )(x_cols, t, scale, bias)


def slab_to_nchw(out_slab, N, Ho, Wo, Cout):
    out = out_slab.astype(jnp.float32).reshape(N, Ho, Wo, Cout)
    return jnp.transpose(out, (0, 3, 1, 2))


def conv_bn_lrelu(x_nchw, w_oihw, b_conv, gamma, beta, run_mean, run_var,
                  *, padding=1, eps=1e-5):
    """NCHW-in / NCHW-out convenience wrapper matching the PyTorch module."""
    N, Cin, H, W = x_nchw.shape
    Cout, _, KH, KW = w_oihw.shape
    Ho = H + 2 * padding - KH + 1
    Wo = W + 2 * padding - KW + 1
    t, scale, bias = pack_conv_bn_params(
        w_oihw, b_conv, gamma, beta, run_mean, run_var,
        W=W, padding=padding, eps=eps)
    x_cols = nchw_to_cols(x_nchw, KH=KH, padding=padding)
    out_slab = conv_bn_lrelu_slab(x_cols, t, scale, bias)
    return slab_to_nchw(out_slab, N, Ho, Wo, Cout)


if __name__ == "__main__":
    # Module config: Conv(inC=4, outC=8, ksize=3, stride=1, padding=1)
    N, Cin, H, W = 2, 4, 16, 16
    Cout, K = 8, 3

    key = jax.random.PRNGKey(0)
    kx, kw, kb, kg, kbe, km, kv = jax.random.split(key, 7)

    x = jax.random.normal(kx, (N, Cin, H, W), dtype=jnp.float32)

    # Deterministic synthetic parameters (shapes from nn.Conv2d / nn.BatchNorm2d)
    w_conv = jax.random.normal(kw, (Cout, Cin, K, K), dtype=jnp.float32) * 0.1
    b_conv = jax.random.normal(kb, (Cout,), dtype=jnp.float32) * 0.1
    gamma = 1.0 + 0.1 * jax.random.normal(kg, (Cout,), dtype=jnp.float32)
    beta = 0.1 * jax.random.normal(kbe, (Cout,), dtype=jnp.float32)
    run_mean = 0.1 * jax.random.normal(km, (Cout,), dtype=jnp.float32)
    run_var = jnp.abs(1.0 + 0.1 * jax.random.normal(kv, (Cout,), dtype=jnp.float32))

    out = conv_bn_lrelu(x, w_conv, b_conv, gamma, beta, run_mean, run_var)
    out = jax.block_until_ready(out)
    assert out.shape == (N, Cout, H, W), out.shape

    # Pure-XLA reference (loose tolerance: kernel uses bf16 operands + bf16 output).
    z = jax.lax.conv_general_dilated(
        x, w_conv, window_strides=(1, 1), padding=((1, 1), (1, 1)),
        dimension_numbers=("NCHW", "OIHW", "NCHW"))
    z = z + b_conv.reshape(1, Cout, 1, 1)
    s_ref = gamma / jnp.sqrt(run_var + 1e-5)
    z = (z - run_mean.reshape(1, Cout, 1, 1)) * s_ref.reshape(1, Cout, 1, 1) \
        + beta.reshape(1, Cout, 1, 1)
    ref = jnp.where(z > 0, z, 0.1 * z)
    assert bool(jnp.allclose(out, ref, atol=5e-2, rtol=5e-2)), \
        float(jnp.max(jnp.abs(out - ref)))

    print("KERNEL_OK")
</pallas_src>

<mosaic_0001>
module attributes {stable_mosaic.version = 11 : i64} {
  func.func @_conv_bn_lrelu_kernel(%arg0: i32, %arg1: i32, %arg2: memref<16x256xbf16, #tpu.memory_space<vmem>>, %arg3: memref<256x128xbf16, #tpu.memory_space<vmem>>, %arg4: memref<1x128xf32, #tpu.memory_space<vmem>>, %arg5: memref<1x128xf32, #tpu.memory_space<vmem>>, %arg6: memref<16x128xbf16, #tpu.memory_space<vmem>>) attributes {dimension_semantics = [#tpu.dimension_semantics<parallel>, #tpu.dimension_semantics<parallel>], iteration_bounds = array<i64: 2, 1>, scalar_prefetch = 0 : i64, scratch_operands = 0 : i64, tpu.core_type = #tpu.core_type<tc>, window_params = [{transform_indices = @transform_0, window_bounds = array<i64: 16, 256>}, {transform_indices = @transform_1, window_bounds = array<i64: 256, 128>}, {transform_indices = @transform_2, window_bounds = array<i64: 1, 128>}, {transform_indices = @transform_3, window_bounds = array<i64: 1, 128>}, {transform_indices = @transform_4, window_bounds = array<i64: 16, 128>}]} {
    %c0 = arith.constant 0 : index
    %c0_0 = arith.constant 0 : index
    %0 = vector.load %arg2[%c0, %c0_0] : memref<16x256xbf16, #tpu.memory_space<vmem>>, vector<16x256xbf16>
    %c0_1 = arith.constant 0 : index
    %c0_2 = arith.constant 0 : index
    %1 = vector.load %arg3[%c0_1, %c0_2] : memref<256x128xbf16, #tpu.memory_space<vmem>>, vector<256x128xbf16>
    %cst = arith.constant dense<0.000000e+00> : vector<16x128xf32>
    %2 = tpu.matmul %0, %1, %cst {dimension_numbers = #tpu.dot_dimension_numbers<[1], [0], [0], [1], [0, 0, 1, 1], [], []>} : vector<16x256xbf16>, vector<256x128xbf16>, vector<16x128xf32> -> vector<16x128xf32>
    %c0_3 = arith.constant 0 : index
    %c0_4 = arith.constant 0 : index
    %3 = vector.load %arg4[%c0_3, %c0_4] : memref<1x128xf32, #tpu.memory_space<vmem>>, vector<1x128xf32>
    %4 = vector.broadcast %3 : vector<1x128xf32> to vector<16x128xf32>
    %5 = arith.mulf %2, %4 : vector<16x128xf32>
    %c0_5 = arith.constant 0 : index
    %c0_6 = arith.constant 0 : index
    %6 = vector.load %arg5[%c0_5, %c0_6] : memref<1x128xf32, #tpu.memory_space<vmem>>, vector<1x128xf32>
    %7 = vector.broadcast %6 : vector<1x128xf32> to vector<16x128xf32>
    %8 = arith.addf %5, %7 : vector<16x128xf32>
    %cst_7 = arith.constant 1.000000e-01 : f32
    %9 = vector.broadcast %cst_7 : f32 to vector<16x128xf32>
    %10 = arith.mulf %9, %8 : vector<16x128xf32>
    %11 = arith.maximumf %8, %10 : vector<16x128xf32>
    %12 = arith.truncf %11 : vector<16x128xf32> to vector<16x128xbf16>
    %c0_8 = arith.constant 0 : index
    %c0_9 = arith.constant 0 : index
    %13 = vector.load %arg6[%c0_8, %c0_9] : memref<16x128xbf16, #tpu.memory_space<vmem>>, vector<16x128xbf16>
    tpu.vector_store %arg6[%c0_8, %c0_9], %12 {strides = array<i32>} : memref<16x128xbf16, #tpu.memory_space<vmem>>, vector<16x128xbf16>,
    return
  }
  func.func @transform_0(%arg0: i32, %arg1: i32) -> (i32, i32) {
    %c0_i32 = arith.constant 0 : i32
    %c0_i32_0 = arith.constant 0 : i32
    return %arg0, %c0_i32 : i32, i32
  }
  func.func @transform_1(%arg0: i32, %arg1: i32) -> (i32, i32) {
    %c0_i32 = arith.constant 0 : i32
    %c0_i32_0 = arith.constant 0 : i32
    return %c0_i32, %arg1 : i32, i32
  }
  func.func @transform_2(%arg0: i32, %arg1: i32) -> (i32, i32) {
    %c0_i32 = arith.constant 0 : i32
    %c0_i32_0 = arith.constant 0 : i32
    return %c0_i32, %arg1 : i32, i32
  }
  func.func @transform_3(%arg0: i32, %arg1: i32) -> (i32, i32) {
    %c0_i32 = arith.constant 0 : i32
    %c0_i32_0 = arith.constant 0 : i32
    return %c0_i32, %arg1 : i32, i32
  }
  func.func @transform_4(%arg0: i32, %arg1: i32) -> (i32, i32) {
    %c0_i32 = arith.constant 0 : i32
    return %arg0, %arg1 : i32, i32
  }
}

</mosaic_0001>

<llo_original>
// kernel: tpu_custom_call.1
$region0: #{tpu_custom_call.1}
  #allocation0 [shape = 'u32[]', space=smem, size = 0x4, offset = 0x4, fixed_abs, tag = 'smem constant byte address 0x4 - core index']
  #allocation1 [shape = 'u32[144,128]{1,0:T(1,128)}', space=vmem, size = 0x12000, scoped, tag = 'internal scratch']
  %s0 = inlined_call_operand.hbm [shape: bf16[32,256], index: 0, kind: input, shape index: {}]
  %s1 = inlined_call_operand.hbm [shape: bf16[256,128], index: 1, kind: input, shape index: {}]
  %s2 = inlined_call_operand.vmem [shape: f32[1,128], index: 2, kind: input, shape index: {}]
  %s3 = inlined_call_operand.vmem [shape: f32[1,128], index: 3, kind: input, shape index: {}]
  %s4 = inlined_call_operand.hbm [shape: bf16[32,128], index: 4, kind: output, shape index: {}]
  %s5 = sld [smem:[#allocation0]]
  $region57: #{tpu_custom_call.1} parent=0
    _
  %s7 = ssub.s32 1, %s5
  %s8 = scalar_select 0, %s7, %s5
  $region1: #{tpu_custom_call.1} parent=0
    #allocation2 [shape = 'u8[16384]{0}', space=vmem, size = 0x4000, scoped, tag = 'input window, operand 0']
    #allocation3 [shape = 's32[2]{0}', space=sflag, size = 0x8, scoped, tag = 'scoped memory for tpu_custom_call.1']
    #allocation4 [shape = 's32[2]{0}', space=sflag, size = 0x8, scoped, tag = 'scoped memory for tpu_custom_call.1']
    #allocation5 [shape = 'u8[65536]{0}', space=vmem, size = 0x10000, scoped, tag = 'input window, operand 1, single buffered']
    #allocation6 [shape = 's32[1]{0}', space=sflag, size = 0x4, scoped, tag = 'scoped memory for tpu_custom_call.1']
    #allocation7 [shape = 'u8[8192]{0}', space=vmem, size = 0x2000, scoped, tag = 'output window, operand 0']
    %9 = vsyncpa [#allocation3], 0
    %s10 = scalar_lea.sflag [#allocation3], 1
    %11 = vsyncpa %s10, 0
    %12 = vsyncpa [#allocation6], 0
    %13 = vsyncpa [#allocation4], 0
    %s14 = scalar_lea.sflag [#allocation4], 1
    %15 = vsyncpa %s14, 0
    loop: start=0, step=1, limit=4
    $region2: #{tpu_custom_call.1} parent=1 // loop_pre_header
      _
    $region3: #{tpu_custom_call.1} parent=1 // loop_header
      %s17 = sphi 0, %s21
      %p18 = scmp.ge.s32.totalorder %s17, 4
      %s24 = sphi 0, %s36
      %s25 = sphi 0, %s32
      %s26 = sphi 0, %s24
      %s27 = sphi 0, %s25
      %s28 = sphi 0, %s26
      %s29 = sphi 0, %s27
      %s39 = sphi 0, %s41
      %s42 = sphi 0, %s39
      %s43 = sphi 0, %s42
      %s59 = sphi 0, %s43
      %s65 = sphi 0, %s67
      %s68 = sphi 0, %s65
      %s69 = sphi 0, %s68
      %s85 = sphi 0, %s69
      %s91 = sphi 0, %s93
      %s94 = sphi 0, %s91
      %s95 = sphi 0, %s94
      %s111 = sphi 0, %s95
      %s117 = sphi 0, %s119
      %s120 = sphi 0, %s117
      %s121 = sphi 0, %s120
      %s137 = sphi 0, %s121
      %s145 = sphi 0, %s147
      %s148 = sphi 0, %s145
      %s149 = sphi 0, %s148
      %s165 = sphi 0, %s149
    $region4: #{tpu_custom_call.1} parent=1 // loop_header_branch
      %20 = sbr.rel (%p18) target = $region8
    $region5: #{tpu_custom_call.1} parent=1 // loop_body
      %s22 = ssub.s32 %s17, 1
      %s23 = ssub.s32 %s17, 2
      %s30 = sadd.s32 1, %s25
      %p31 = scmp.ge.s32.totalorder %s30, 1
      %s32 = scalar_select %p31, 0, %s30
      %s33 = sadd.s32 1, %s24
      %s34 = scalar_select %p31, %s33, %s24
      %p35 = scmp.ge.s32.totalorder %s34, 2
      %s36 = scalar_select %p35, 0, %s34
      %s37 = ssub.s32 %s24, %s36
      %p38 = scmp.eq.s32.totalorder %s37, 0
      %s40 = sadd.s32 %s39, 1
      %s41 = scalar_select %p38, %s39, %s40
      %p44 = pneg %p38
      %p45 = scmp.eq.s32.totalorder %s17, 1
      %p46 = por %p44, %p45
      %p47 = scmp.ne.s32.totalorder %s39, %s42
      %p48 = scmp.eq.s32.totalorder %s17, 0
      %p49 = por %p47, %p48
      %p50 = scmp.ne.s32.totalorder %s39, %s42
      %p51 = scmp.eq.s32.totalorder %s22, 1
      %p52 = por %p50, %p51
      %p53 = scmp.ne.s32.totalorder %s42, %s43
      %p54 = scmp.eq.s32.totalorder %s22, 0
      %p55 = por %p53, %p54
      %p56 = scmp.ne.s32.totalorder %s42, %s43
      %p57 = scmp.eq.s32.totalorder %s23, 1
      %p58 = por %p56, %p57
      %p60 = scmp.ne.s32.totalorder %s43, %s59
      %p61 = scmp.eq.s32.totalorder %s23, 0
      %p62 = por %p60, %p61
      %s63 = ssub.s32 %s25, %s32
      %p64 = scmp.eq.s32.totalorder %s63, 0
      %s66 = sadd.s32 %s65, 1
      %s67 = scalar_select %p64, %s65, %s66
      %p70 = pneg %p64
      %p71 = scmp.eq.s32.totalorder %s17, 1
      %p72 = por %p70, %p71
      %p73 = scmp.ne.s32.totalorder %s65, %s68
      %p74 = scmp.eq.s32.totalorder %s17, 0
      %p75 = por %p73, %p74
      %p76 = scmp.ne.s32.totalorder %s65, %s68
      %p77 = scmp.eq.s32.totalorder %s22, 1
      %p78 = por %p76, %p77
      %p79 = scmp.ne.s32.totalorder %s68, %s69
      %p80 = scmp.eq.s32.totalorder %s22, 0
      %p81 = por %p79, %p80
      %p82 = scmp.ne.s32.totalorder %s68, %s69
      %p83 = scmp.eq.s32.totalorder %s23, 1
      %p84 = por %p82, %p83
      %p86 = scmp.ne.s32.totalorder %s69, %s85
      %p87 = scmp.eq.s32.totalorder %s23, 0
      %p88 = por %p86, %p87
      %s89 = ssub.s32 %s25, %s32
      %p90 = scmp.eq.s32.totalorder %s89, 0
      %s92 = sadd.s32 %s91, 1
      %s93 = scalar_select %p90, %s91, %s92
      %p96 = pneg %p90
      %p97 = scmp.eq.s32.totalorder %s17, 1
      %p98 = por %p96, %p97
      %p99 = scmp.ne.s32.totalorder %s91, %s94
      %p100 = scmp.eq.s32.totalorder %s17, 0
      %p101 = por %p99, %p100
      %p102 = scmp.ne.s32.totalorder %s91, %s94
      %p103 = scmp.eq.s32.totalorder %s22, 1
      %p104 = por %p102, %p103
      %p105 = scmp.ne.s32.totalorder %s94, %s95
      %p106 = scmp.eq.s32.totalorder %s22, 0
      %p107 = por %p105, %p106
      %p108 = scmp.ne.s32.totalorder %s94, %s95
      %p109 = scmp.eq.s32.totalorder %s23, 1
      %p110 = por %p108, %p109
      %p112 = scmp.ne.s32.totalorder %s95, %s111
      %p113 = scmp.eq.s32.totalorder %s23, 0
      %p114 = por %p112, %p113
      %s115 = ssub.s32 %s25, %s32
      %p116 = scmp.eq.s32.totalorder %s115, 0
      %s118 = sadd.s32 %s117, 1
      %s119 = scalar_select %p116, %s117, %s118
      %p122 = pneg %p116
      %p123 = scmp.eq.s32.totalorder %s17, 1
      %p124 = por %p122, %p123
      %p125 = scmp.ne.s32.totalorder %s117, %s120
      %p126 = scmp.eq.s32.totalorder %s17, 0
      %p127 = por %p125, %p126
      %p128 = scmp.ne.s32.totalorder %s117, %s120
      %p129 = scmp.eq.s32.totalorder %s22, 1
      %p130 = por %p128, %p129
      %p131 = scmp.ne.s32.totalorder %s120, %s121
      %p132 = scmp.eq.s32.totalorder %s22, 0
      %p133 = por %p131, %p132
      %p134 = scmp.ne.s32.totalorder %s120, %s121
      %p135 = scmp.eq.s32.totalorder %s23, 1
      %p136 = por %p134, %p135
      %p138 = scmp.ne.s32.totalorder %s121, %s137
      %p139 = scmp.eq.s32.totalorder %s23, 0
      %p140 = por %p138, %p139
      %s141 = ssub.s32 %s24, %s36
      %s142 = ssub.s32 %s25, %s32
      %s143 = sor.u32 %s141, %s142
      %p144 = scmp.eq.s32.totalorder %s143, 0
      %s146 = sadd.s32 %s145, 1
      %s147 = scalar_select %p144, %s145, %s146
      %p150 = pneg %p144
      %p151 = scmp.eq.s32.totalorder %s17, 1
      %p152 = por %p150, %p151
      %p153 = scmp.ne.s32.totalorder %s145, %s148
      %p154 = scmp.eq.s32.totalorder %s17, 0
      %p155 = por %p153, %p154
      %p156 = scmp.ne.s32.totalorder %s145, %s148
      %p157 = scmp.eq.s32.totalorder %s22, 1
      %p158 = por %p156, %p157
      %p159 = scmp.ne.s32.totalorder %s148, %s149
      %p160 = scmp.eq.s32.totalorder %s22, 0
      %p161 = por %p159, %p160
      %p162 = scmp.ne.s32.totalorder %s148, %s149
      %p163 = scmp.eq.s32.totalorder %s23, 1
      %p164 = por %p162, %p163
      %p166 = scmp.ne.s32.totalorder %s149, %s165
      %p167 = scmp.eq.s32.totalorder %s23, 0
      %p168 = por %p166, %p167
      %p169 = scmp.le.s32.totalorder 1, %s17
      %p170 = scmp.lt.s32.totalorder %s17, 3
      %p171 = pnand %p169, %p170
      %p172 = pneg %p171
      // Predicated region
      $region9: #{tpu_custom_call.1} parent=5 // pred_check
        _
      $region10: #{tpu_custom_call.1} parent=5 // pred_check_branch
        %174 = sbr.rel (%p171) target = $region12
      $region11: #{tpu_custom_call.1} parent=5 // pred_region
        %s175 = ssub.s32 %s17, 1
        // Predicated region
        $region13: #{tpu_custom_call.1} parent=11 // pred_check
          %p176 = pneg %p81
        $region14: #{tpu_custom_call.1} parent=11 // pred_check_branch
          %178 = sbr.rel (%p176) target = $region16
        $region15: #{tpu_custom_call.1} parent=11 // pred_region
          %s180 = ssub.s32 2048, 2048
          %181 = vsyncadd [#allocation6], %s180
          %s182 = smul.addr %s27, 64
          %s183 = scalar_lea.hbm %s1, %s182
          %s184 = sshll.u32 [#allocation5], 4
          %s185 = int_to_ptr.vmem [resolvable:$true] %s184
          %190 = dma.hbm_to_vmem [thread:$0]  %s183, 2048, %s185, [#allocation6], 64, 64, 4
        $region16: #{tpu_custom_call.1} parent=11 // pred_fallthru
          _
        // Predicated region
        $region17: #{tpu_custom_call.1} parent=11 // pred_check
          %p191 = pneg %p107
        $region18: #{tpu_custom_call.1} parent=11 // pred_check_branch
          %193 = sbr.rel (%p191) target = $region20
        $region19: #{tpu_custom_call.1} parent=11 // pred_region
          %p194 = scmp.lt.s32.totalorder %s27, 0
          %s195 = scalar_select %p194, %s27, 0
          %s196 = scalar_lea.vmem %s2, %s195
        $region20: #{tpu_custom_call.1} parent=11 // pred_fallthru
          _
        // Predicated region
        $region21: #{tpu_custom_call.1} parent=11 // pred_check
          %p197 = pneg %p133
        $region22: #{tpu_custom_call.1} parent=11 // pred_check_branch
          %199 = sbr.rel (%p197) target = $region24
        $region23: #{tpu_custom_call.1} parent=11 // pred_region
          %p200 = scmp.lt.s32.totalorder %s27, 0
          %s201 = scalar_select %p200, %s27, 0
          %s202 = scalar_lea.vmem %s3, %s201
        $region24: #{tpu_custom_call.1} parent=11 // pred_fallthru
          _
      $region12: #{tpu_custom_call.1} parent=5 // pred_fallthru
        _
      %p203 = scmp.lt.s32.totalorder %s17, 2
      // Predicated region
      $region25: #{tpu_custom_call.1} parent=5 // pred_check
        %p204 = pneg %p203
      $region26: #{tpu_custom_call.1} parent=5 // pred_check_branch
        %206 = sbr.rel (%p204) target = $region28
      $region27: #{tpu_custom_call.1} parent=5 // pred_region
        // Predicated region
        $region29: #{tpu_custom_call.1} parent=27 // pred_check
          %p207 = pneg %p49
        $region30: #{tpu_custom_call.1} parent=27 // pred_check_branch
          %209 = sbr.rel (%p207) target = $region32
        $region31: #{tpu_custom_call.1} parent=27 // pred_region
          %s210 = sand.u32 %s39, 1
          %s211 = scalar_lea.sflag [#allocation3], %s210
          %s212 = sand.u32 %s39, 1
          %s213 = smul.addr %s212, 16
          %s214 = scalar_lea.vmem [#allocation2], %s213
          %s215 = smul.u32 2, %s24
          %s217 = ssub.s32 256, 256
          %218 = vsyncadd %s211, %s217
          %s219 = smul.addr %s215, 2
          %s220 = smul.addr %s219, 64
          %s221 = scalar_lea.hbm %s0, %s220
          %s222 = sshll.u32 %s214, 4
          %s223 = int_to_ptr.vmem [resolvable:$true] %s222
          %228 = dma.hbm_to_vmem [thread:$0]  %s221, 256, %s223, %s211, 128, 128, 8
        $region32: #{tpu_custom_call.1} parent=27 // pred_fallthru
          _
      $region28: #{tpu_custom_call.1} parent=5 // pred_fallthru
        _
      %p229 = scmp.le.s32.totalorder 1, %s17
      %p230 = scmp.lt.s32.totalorder %s17, 3
      %p231 = pnand %p229, %p230
      %p232 = pneg %p231
      // Predicated region
      $region33: #{tpu_custom_call.1} parent=5 // pred_check
        _
      $region34: #{tpu_custom_call.1} parent=5 // pred_check_branch
        %234 = sbr.rel (%p231) target = $region36
      $region35: #{tpu_custom_call.1} parent=5 // pred_region
        %s235 = ssub.s32 %s17, 1
        %s236 = sand.u32 %s42, 1
        %s237 = scalar_lea.sflag [#allocation3], %s236
        %s238 = sand.u32 %s42, 1
        %s239 = smul.addr %s238, 16
        %s240 = scalar_lea.vmem [#allocation2], %s239
        // Predicated region
        $region37: #{tpu_custom_call.1} parent=35 // pred_check
          %p241 = pneg %p55
        $region38: #{tpu_custom_call.1} parent=35 // pred_check_branch
          %243 = sbr.rel (%p241) target = $region40
        $region39: #{tpu_custom_call.1} parent=35 // pred_region
          %244 = dma.done %s237, 256
        $region40: #{tpu_custom_call.1} parent=35 // pred_fallthru
          _
        // Predicated region
        $region41: #{tpu_custom_call.1} parent=35 // pred_check
          %p245 = pneg %p81
        $region42: #{tpu_custom_call.1} parent=35 // pred_check_branch
          %247 = sbr.rel (%p245) target = $region44
        $region43: #{tpu_custom_call.1} parent=35 // pred_region
          %248 = dma.done [#allocation6], 2048
        $region44: #{tpu_custom_call.1} parent=35 // pred_fallthru
          _
        %s249 = sand.u32 %s42, 1
        %s250 = scalar_lea.sflag [#allocation3], %s249
        %s251 = sand.u32 %s42, 1
        %s252 = smul.addr %s251, 16
        %s253 = scalar_lea.vmem [#allocation2], %s252
        %p254 = pneg %p55
        %p255 = pneg %p52
        %p256 = pneg %p81
        %p257 = pneg %p78
        %p258 = scmp.lt.s32.totalorder %s27, 0
        %s259 = scalar_select %p258, %s27, 0
        %s260 = scalar_lea.vmem %s2, %s259
        %p261 = pneg %p107
        %p262 = pneg %p104
        %p263 = scmp.lt.s32.totalorder %s27, 0
        %s264 = scalar_select %p263, %s27, 0
        %s265 = scalar_lea.vmem %s3, %s264
        %p266 = pneg %p133
        %p267 = pneg %p130
        %p268 = pneg %p161
        %p269 = pneg %p158
        %s270 = sand.u32 %s148, 1
        %s271 = scalar_lea.sflag [#allocation4], %s270
        %s272 = sand.u32 %s148, 1
        %s273 = smul.addr %s272, 8
        %s274 = scalar_lea.vmem [#allocation7], %s273
        %s275 = smul.u32 2, %s26
        %p276 = scmp.lt.s32.totalorder %s27, 0
        %s277 = scalar_select %p276, %s27, 0
        %s278 = scalar_lea.vmem %s2, %s277
        %p279 = scmp.lt.s32.totalorder %s27, 0
        %s280 = scalar_select %p279, %s27, 0
        %s281 = scalar_lea.vmem %s3, %s280
        %s282 = smul.u32 2, %s26
        %v284 = vld [vmem:[%s240] sm:$0xff]
        %v285 = vld [vmem:[%s240 + $0x8] sm:$0xff]
        %v286 = vld [vmem:[#allocation5] sm:$0xf]
        %v287 = vld [vmem:[#allocation5 + $0x4] sm:$0xf]
        %v288 = vld [vmem:[#allocation5 + $0x8] sm:$0xf]
        %v289 = vld [vmem:[#allocation5 + $0xc] sm:$0xf]
        %v290 = vld [vmem:[#allocation5 + $0x10] sm:$0xf]
        %v291 = vld [vmem:[#allocation5 + $0x14] sm:$0xf]
        %v292 = vld [vmem:[#allocation5 + $0x18] sm:$0xf]
        %v293 = vld [vmem:[#allocation5 + $0x1c] sm:$0xf]
        %v294 = vld [vmem:[#allocation5 + $0x20] sm:$0xf]
        %v295 = vld [vmem:[#allocation5 + $0x24] sm:$0xf]
        %v296 = vld [vmem:[#allocation5 + $0x28] sm:$0xf]
        %v297 = vld [vmem:[#allocation5 + $0x2c] sm:$0xf]
        %v298 = vld [vmem:[#allocation5 + $0x30] sm:$0xf]
        %v299 = vld [vmem:[#allocation5 + $0x34] sm:$0xf]
        %v300 = vld [vmem:[#allocation5 + $0x38] sm:$0xf]
        %v301 = vld [vmem:[#allocation5 + $0x3c] sm:$0xf]
        %v302 = vld [vmem:[#allocation5 + $0x40] sm:$0xf]
        %v303 = vld [vmem:[#allocation5 + $0x44] sm:$0xf]
        %v304 = vld [vmem:[#allocation5 + $0x48] sm:$0xf]
        %v305 = vld [vmem:[#allocation5 + $0x4c] sm:$0xf]
        %v306 = vld [vmem:[#allocation5 + $0x50] sm:$0xf]
        %v307 = vld [vmem:[#allocation5 + $0x54] sm:$0xf]
        %v308 = vld [vmem:[#allocation5 + $0x58] sm:$0xf]
        %v309 = vld [vmem:[#allocation5 + $0x5c] sm:$0xf]
        %v310 = vld [vmem:[#allocation5 + $0x60] sm:$0xf]
        %v311 = vld [vmem:[#allocation5 + $0x64] sm:$0xf]
        %v312 = vld [vmem:[#allocation5 + $0x68] sm:$0xf]
        %v313 = vld [vmem:[#allocation5 + $0x6c] sm:$0xf]
        %v314 = vld [vmem:[#allocation5 + $0x70] sm:$0xf]
        %v315 = vld [vmem:[#allocation5 + $0x74] sm:$0xf]
        %v316 = vld [vmem:[#allocation5 + $0x78] sm:$0xf]
        %v317 = vld [vmem:[#allocation5 + $0x7c] sm:$0xf]
        %v320 = vunpack.c.l.b16 %v284
        %v321 = vunpack.c.h.b16 %v284
        %v322 = vunpack.c.l.b16 %v285
        %v323 = vunpack.c.h.b16 %v285
        %v324 = vpack.c.b16 %v322, %v320
        %v325 = vpack.c.b16 %v323, %v321
        %v360 = vunpack.c.l.b16 %v286
        %v361 = vunpack.c.l.b16 %v287
        %v362 = vunpack.c.l.b16 %v288
        %v363 = vunpack.c.l.b16 %v289
        %v364 = vunpack.c.l.b16 %v290
        %v365 = vunpack.c.l.b16 %v291
        %v366 = vunpack.c.l.b16 %v292
        %v367 = vunpack.c.l.b16 %v293
        %v368 = vunpack.c.l.b16 %v294
        %v369 = vunpack.c.l.b16 %v295
        %v370 = vunpack.c.l.b16 %v296
        %v371 = vunpack.c.l.b16 %v297
        %v372 = vunpack.c.l.b16 %v298
        %v373 = vunpack.c.l.b16 %v299
        %v374 = vunpack.c.l.b16 %v300
        %v375 = vunpack.c.l.b16 %v301
        %v376 = vunpack.c.l.b16 %v302
        %v377 = vunpack.c.l.b16 %v303
        %v378 = vunpack.c.l.b16 %v304
        %v379 = vunpack.c.l.b16 %v305
        %v380 = vunpack.c.l.b16 %v306
        %v381 = vunpack.c.l.b16 %v307
        %v382 = vunpack.c.l.b16 %v308
        %v383 = vunpack.c.l.b16 %v309
        %v384 = vunpack.c.l.b16 %v310
        %v385 = vunpack.c.l.b16 %v311
        %v386 = vunpack.c.l.b16 %v312
        %v387 = vunpack.c.l.b16 %v313
        %v388 = vunpack.c.l.b16 %v314
        %v389 = vunpack.c.l.b16 %v315
        %v390 = vunpack.c.l.b16 %v316
        %v391 = vunpack.c.l.b16 %v317
        %v392 = vpack.c.b16 %v361, %v360
        %v393 = vpack.c.b16 %v363, %v362
        %v394 = vpack.c.b16 %v365, %v364
        %v395 = vpack.c.b16 %v367, %v366
        %v396 = vpack.c.b16 %v369, %v368
        %v397 = vpack.c.b16 %v371, %v370
        %v398 = vpack.c.b16 %v373, %v372
        %v399 = vpack.c.b16 %v375, %v374
        %v400 = vpack.c.b16 %v377, %v376
        %v401 = vpack.c.b16 %v379, %v378
        %v402 = vpack.c.b16 %v381, %v380
        %v403 = vpack.c.b16 %v383, %v382
        %v404 = vpack.c.b16 %v385, %v384
        %v405 = vpack.c.b16 %v387, %v386
        %v406 = vpack.c.b16 %v389, %v388
        %v407 = vpack.c.b16 %v391, %v390
        %424 = vmatprep.subr.bf16.mxu0 0
        %425 = vmatpush1.bf16.msra.mxu0 %v399
        %426 = vmatprep.subr.bf16.mxu0 0
        %427 = vmatpush1.bf16.msra.mxu0 %v398
        %428 = vmatprep.subr.bf16.mxu0 0
        %429 = vmatpush1.bf16.msra.mxu0 %v397
        %430 = vmatprep.subr.bf16.mxu0 0
        %431 = vmatpush1.bf16.msra.mxu0 %v396
        %432 = vmatprep.subr.bf16.mxu0 0
        %433 = vmatpush1.bf16.msra.mxu0 %v395
        %434 = vmatprep.subr.bf16.mxu0 0
        %435 = vmatpush1.bf16.msra.mxu0 %v394
        %436 = vmatprep.subr.bf16.mxu0 0
        %437 = vmatpush1.bf16.msra.mxu0 %v393
        %438 = vmatprep.subr.bf16.mxu0 0
        %439 = vmatpush1.bf16.msra.mxu0 %v392
        %440 = vmatprep.subr.bf16.mxu0 0
        %441 = vmatpush2.bf16.msra.mxu0 %v407
        %442 = vmatprep.subr.bf16.mxu0 0
        %443 = vmatpush2.bf16.msra.mxu0 %v406
        %444 = vmatprep.subr.bf16.mxu0 0
        %445 = vmatpush2.bf16.msra.mxu0 %v405
        %446 = vmatprep.subr.bf16.mxu0 0
        %447 = vmatpush2.bf16.msra.mxu0 %v404
        %448 = vmatprep.subr.bf16.mxu0 0
        %449 = vmatpush2.bf16.msra.mxu0 %v403
        %450 = vmatprep.subr.bf16.mxu0 0
        %451 = vmatpush2.bf16.msra.mxu0 %v402
        %452 = vmatprep.subr.bf16.mxu0 0
        %453 = vmatpush2.bf16.msra.mxu0 %v401
        %454 = vmatprep.subr.bf16.mxu0 0
        %455 = vmatpush2.bf16.msra.mxu0 %v400
        %456 = vmatprep.mubr.bf16.mxu0 %v325
        %457 = vmatmul.mubr.bf16.gmra.mxu0 %v324
        %v458 = vpop.f32.mrf.mxu0
        %v459 = vadd.f32 0.0, %v458
        %v460 = vpop.f32.mrf.mxu0
        %v461 = vpop.f32.mrf.mxu0
        %v462 = vadd.f32 0.0, %v461
        %v463 = vpop.f32.mrf.mxu0
        %464 = vdwg.mxu0
        %v465 = vld [vmem:[%s278] sm:$0x1]
        %v467 = vlaneseq
        %v468 = vshrl.u32 %v467, 7
        %v469 = vsub.s32 0, %v468
        %v470 = vrot.slane %v465, %v469
        %v472 = vmul.f32 %v459, %v470
        %v473 = vmul.f32 %v462, %v470
        %v474 = vld [vmem:[%s281] sm:$0x1]
        %v476 = vlaneseq
        %v477 = vshrl.u32 %v476, 7
        %v478 = vsub.s32 0, %v477
        %v479 = vrot.slane %v474, %v478
        %v481 = vadd.f32 %v472, %v479
        %v482 = vadd.f32 %v473, %v479
        %v483 = vmul.f32 %v481, 0.1
        %v484 = vmul.f32 %v482, 0.1
        %v485 = vmax.f32 %v481, %v483
        %v486 = vmax.f32 %v482, %v484
        %v487 = vpack.c.bf16 %v486, %v485
        %v489 = vunpack.c.l.b16 %v487
        %v490 = vunpack.c.h.b16 %v487
        %v491 = vpack.c.b16 %v489, %v489
        %v492 = vpack.c.b16 %v490, %v490
        %495 = vst [vmem:[%s274] sm:$0xf] %v491
        %496 = vst [vmem:[%s274 + $0x4] sm:$0xf] %v492
        %s497 = sand.u32 %s148, 1
        %s498 = scalar_lea.sflag [#allocation4], %s497
        %s499 = sand.u32 %s148, 1
        %s500 = smul.addr %s499, 8
        %s501 = scalar_lea.vmem [#allocation7], %s500
        // Predicated region
        $region45: #{tpu_custom_call.1} parent=35 // pred_check
          %p502 = pneg %p158
        $region46: #{tpu_custom_call.1} parent=35 // pred_check_branch
          %504 = sbr.rel (%p502) target = $region48
        $region47: #{tpu_custom_call.1} parent=35 // pred_region
          %s505 = smul.u32 2, %s26
          %s507 = ssub.s32 128, 128
          %508 = vsyncadd %s498, %s507
          %s509 = sadd.s32 %s27, %s505
          %s510 = smul.addr %s509, 64
          %s511 = scalar_lea.hbm %s4, %s510
          %s512 = sshll.u32 %s501, 4
          %s513 = int_to_ptr.vmem [resolvable:$true] %s512
          %518 = dma.vmem_to_hbm [thread:$0]  %s513, 128, %s511, %s498, 64, 64, 4
        $region48: #{tpu_custom_call.1} parent=35 // pred_fallthru
          _
      $region36: #{tpu_custom_call.1} parent=5 // pred_fallthru
        _
      %p519 = scmp.le.s32.totalorder 2, %s17
      // Predicated region
      $region49: #{tpu_custom_call.1} parent=5 // pred_check
        %p520 = pneg %p519
      $region50: #{tpu_custom_call.1} parent=5 // pred_check_branch
        %522 = sbr.rel (%p520) target = $region52
      $region51: #{tpu_custom_call.1} parent=5 // pred_region
        %s523 = ssub.s32 %s17, 2
        // Predicated region
        $region53: #{tpu_custom_call.1} parent=51 // pred_check
          %p524 = pneg %p164
        $region54: #{tpu_custom_call.1} parent=51 // pred_check_branch
          %526 = sbr.rel (%p524) target = $region56
        $region55: #{tpu_custom_call.1} parent=51 // pred_region
          %s527 = sand.u32 %s149, 1
          %s528 = scalar_lea.sflag [#allocation4], %s527
          %s529 = sand.u32 %s149, 1
          %s530 = smul.addr %s529, 8
          %s531 = scalar_lea.vmem [#allocation7], %s530
          %532 = dma.done %s528, 128
        $region56: #{tpu_custom_call.1} parent=51 // pred_fallthru
          _
      $region52: #{tpu_custom_call.1} parent=5 // pred_fallthru
        _
    $region6: #{tpu_custom_call.1} parent=1 // loop_footer
      %s21 = sadd.s32 1, %s17
    $region7: #{tpu_custom_call.1} parent=1 // loop_footer_branch
      %16 = sbr.rel target = $region3
    $region8: #{tpu_custom_call.1} parent=1 // loop_exit
      _
    %533 = vsyncpa [#allocation3], 1
    %s534 = scalar_lea.sflag [#allocation3], 1
    %535 = vsyncpa %s534, 1
    %536 = vsyncpa [#allocation6], 1
    %537 = vsyncpa [#allocation4], 1
    %s538 = scalar_lea.sflag [#allocation4], 1
    %539 = vsyncpa %s538, 1

</llo_original>
